<compile_context>
chip_gen: v7x
topology: tpu7x:2x2x1
jax: 0.10.0
libtpu: 0.0.40
codegen_flags: <defaults>
</compile_context>

<pallas_src>
import functools

import jax
import jax.numpy as jnp
from jax import lax
from jax.experimental import pallas as pl
from jax.experimental.pallas import tpu as pltpu


def _split_latent_kernel(h_ref, w_ref, b_ref, out_ref, *, conti_dim, cat_dim):
    # Single fused matmul over the [cont | cat | pad] columns; f32 accumulation.
    z = jnp.dot(h_ref[...], w_ref[...], preferred_element_type=jnp.float32)
    z = z + b_ref[...].astype(jnp.float32)

    tb, out_pad = z.shape
    lane = lax.broadcasted_iota(jnp.int32, (tb, out_pad), 1)
    is_cont = lane < conti_dim
    is_cat = jnp.logical_and(lane >= conti_dim, lane < conti_dim + cat_dim)

    # Continuous branch: exact (erf) GELU -- matches nn.GELU default.
    inv_sqrt2 = jnp.float32(0.7071067811865476)
    gelu = 0.5 * z * (1.0 + lax.erf(z * inv_sqrt2))

    # Categorical branch: softmax over the categorical lanes only.
    zc = jnp.where(is_cat, z, jnp.float32(-jnp.inf))
    m = jnp.max(zc, axis=1, keepdims=True)
    e = jnp.exp(zc - m)                      # non-cat lanes -> exp(-inf) = 0
    s = jnp.sum(e, axis=1, keepdims=True)
    sm = e * pl.reciprocal(s, approx=False)  # exact to keep 1e-5 agreement

    # One lane-dense full-block store (padding lanes sliced off outside).
    out_ref[...] = jnp.where(is_cont, gelu, sm).astype(out_ref.dtype)


def split_latent_forward(h, wc, bc, wk, bk, *,
                         cont_l1_reg=0.01, cont_l2_reg=0.01, block_b=512):
    """h: [B, enc_hid]; wc: [conti_dim, enc_hid]; bc: [conti_dim];
       wk: [cat_dim, enc_hid]; bk: [cat_dim]   (PyTorch nn.Linear layouts).
       Returns (h_out [B, conti_dim + cat_dim], regularization loss scalar)."""
    B, enc_hid = h.shape
    conti_dim = wc.shape[0]
    cat_dim = wk.shape[0]
    out_dim = conti_dim + cat_dim
    out_pad = ((out_dim + 127) // 128) * 128   # lane-dense output slab

    # Fuse the two Linear layers into one [enc_hid, out_pad] weight + bias.
    w_fused = jnp.concatenate([wc.T, wk.T], axis=1)          # [enc_hid, out_dim]
    b_fused = jnp.concatenate([bc, bk]).reshape(1, out_dim)  # [1, out_dim]
    if out_pad != out_dim:
        w_fused = jnp.pad(w_fused, ((0, 0), (0, out_pad - out_dim)))
        b_fused = jnp.pad(b_fused, ((0, 0), (0, out_pad - out_dim)))

    # Batch tile: multiple of 8, capped at block_b, sized against a conservative
    # ~24 MiB VMEM budget (double-buffered h & out tiles + resident weights) so
    # the same tile also fits v7x's 64 MiB physical / 32 MiB scoped VMEM.
    itemsize = jnp.dtype(h.dtype).itemsize
    budget = 24 * 1024 * 1024
    w_bytes = (enc_hid + 1) * out_pad * 4
    tb = max(8, min(block_b, ((B + 7) // 8) * 8))
    tb = (tb // 8) * 8
    while tb > 8 and 2 * tb * (enc_hid + out_pad) * itemsize + w_bytes > budget:
        tb -= 8

    kernel = functools.partial(_split_latent_kernel,
                               conti_dim=conti_dim, cat_dim=cat_dim)

    out_padded = pl.pallas_call(
        kernel,
        out_shape=jax.ShapeDtypeStruct((B, out_pad), h.dtype),
        grid=(pl.cdiv(B, tb),),
        in_specs=[
            pl.BlockSpec((tb, enc_hid), lambda i: (i, 0)),       # streamed batch tile
            pl.BlockSpec((enc_hid, out_pad), lambda i: (0, 0)),  # resident fused weight
            pl.BlockSpec((1, out_pad), lambda i: (0, 0)),        # resident fused bias
        ],
        out_specs=pl.BlockSpec((tb, out_pad), lambda i: (i, 0)),
        compiler_params=pltpu.CompilerParams(
            dimension_semantics=("parallel",),        # v7x: shard batch over 2 TCs
            vmem_limit_bytes=32 * 1024 * 1024),
    )(h, w_fused, b_fused)

    h_out = out_padded[:, :out_dim]

    # Regularization loss depends only on hid_2cont parameters -> plain JAX
    # (off the kernel's critical path; matches torch.norm(params, 1/2)).
    params = jnp.concatenate([wc.reshape(-1), bc.reshape(-1)]).astype(jnp.float32)
    loss = (jnp.float32(cont_l1_reg) * jnp.sum(jnp.abs(params))
            + jnp.float32(cont_l2_reg) * jnp.sqrt(jnp.sum(params * params)))
    return h_out, loss


def _reference_forward(h, wc, bc, wk, bk, l1_reg=0.01, l2_reg=0.01):
    zc = h @ wc.T + bc
    gelu = jax.nn.gelu(zc, approximate=False)
    zk = h @ wk.T + bk
    sm = jax.nn.softmax(zk, axis=1)
    params = jnp.concatenate([wc.reshape(-1), bc.reshape(-1)])
    loss = l1_reg * jnp.sum(jnp.abs(params)) + l2_reg * jnp.sqrt(jnp.sum(params ** 2))
    return jnp.concatenate([gelu, sm], axis=1), loss


if __name__ == "__main__":
    # Small shapes consistent with the module's split configuration:
    # batch=8, enc_hid=32, conti_dim=16, cat_dim=16.
    B, ENC_HID, CONTI, CAT = 8, 32, 16, 16

    key = jax.random.PRNGKey(0)
    k_h, k_wc, k_bc, k_wk, k_bk = jax.random.split(key, 5)

    h = jax.random.normal(k_h, (B, ENC_HID), dtype=jnp.float32)
    # PyTorch nn.Linear layout: weights are [out, in].
    wc = jax.random.normal(k_wc, (CONTI, ENC_HID), dtype=jnp.float32) * 0.1
    bc = jax.random.normal(k_bc, (CONTI,), dtype=jnp.float32) * 0.1
    wk = jax.random.normal(k_wk, (CAT, ENC_HID), dtype=jnp.float32) * 0.1
    bk = jax.random.normal(k_bk, (CAT,), dtype=jnp.float32) * 0.1

    h_out, loss = split_latent_forward(h, wc, bc, wk, bk)
    jax.block_until_ready((h_out, loss))

    ref_h, ref_loss = _reference_forward(h, wc, bc, wk, bk)
    assert jnp.allclose(h_out, ref_h, atol=1e-5, rtol=1e-5)
    assert jnp.allclose(loss, ref_loss, atol=1e-5, rtol=1e-5)

    print("KERNEL_OK")
</pallas_src>

<mosaic_0001>
module attributes {stable_mosaic.version = 11 : i64} {
  func.func @_split_latent_kernel(%arg0: i32, %arg1: memref<8x32xf32, #tpu.memory_space<vmem>>, %arg2: memref<32x128xf32, #tpu.memory_space<vmem>>, %arg3: memref<1x128xf32, #tpu.memory_space<vmem>>, %arg4: memref<8x128xf32, #tpu.memory_space<vmem>>) attributes {dimension_semantics = [#tpu.dimension_semantics<parallel>], iteration_bounds = array<i64: 1>, scalar_prefetch = 0 : i64, scratch_operands = 0 : i64, tpu.core_type = #tpu.core_type<tc>, window_params = [{transform_indices = @transform_0, window_bounds = array<i64: 8, 32>}, {pipeline_mode = #tpu.pipeline_mode<synchronous>, transform_indices = @transform_1, window_bounds = array<i64: 32, 128>}, {pipeline_mode = #tpu.pipeline_mode<synchronous>, transform_indices = @transform_2, window_bounds = array<i64: 1, 128>}, {transform_indices = @transform_3, window_bounds = array<i64: 8, 128>}]} {
    %c0 = arith.constant 0 : index
    %c0_0 = arith.constant 0 : index
    %0 = vector.load %arg1[%c0, %c0_0] : memref<8x32xf32, #tpu.memory_space<vmem>>, vector<8x32xf32>
    %c0_1 = arith.constant 0 : index
    %c0_2 = arith.constant 0 : index
    %1 = vector.load %arg2[%c0_1, %c0_2] : memref<32x128xf32, #tpu.memory_space<vmem>>, vector<32x128xf32>
    %cst = arith.constant dense<0.000000e+00> : vector<8x128xf32>
    %2 = tpu.matmul %0, %1, %cst {dimension_numbers = #tpu.dot_dimension_numbers<[1], [0], [0], [1], [0, 0, 1, 1], [], []>} : vector<8x32xf32>, vector<32x128xf32>, vector<8x128xf32> -> vector<8x128xf32>
    %c0_3 = arith.constant 0 : index
    %c0_4 = arith.constant 0 : index
    %3 = vector.load %arg3[%c0_3, %c0_4] : memref<1x128xf32, #tpu.memory_space<vmem>>, vector<1x128xf32>
    %4 = vector.broadcast %3 : vector<1x128xf32> to vector<8x128xf32>
    %5 = arith.addf %2, %4 : vector<8x128xf32>
    %6 = tpu.iota {dimensions = array<i32: 1>} : vector<8x128xi32>
    %c16_i32 = arith.constant 16 : i32
    %7 = vector.broadcast %c16_i32 : i32 to vector<8x128xi32>
    %8 = arith.cmpi slt, %6, %7 : vector<8x128xi32>
    %c16_i32_5 = arith.constant 16 : i32
    %9 = vector.broadcast %c16_i32_5 : i32 to vector<8x128xi32>
    %10 = arith.cmpi sge, %6, %9 : vector<8x128xi32>
    %c32_i32 = arith.constant 32 : i32
    %11 = vector.broadcast %c32_i32 : i32 to vector<8x128xi32>
    %12 = arith.cmpi slt, %6, %11 : vector<8x128xi32>
    %13 = arith.andi %10, %12 : vector<8x128xi1>
    %cst_6 = arith.constant 5.000000e-01 : f32
    %14 = vector.broadcast %cst_6 : f32 to vector<8x128xf32>
    %15 = arith.mulf %14, %5 : vector<8x128xf32>
    %cst_7 = arith.constant 0.707106769 : f32
    %16 = vector.broadcast %cst_7 : f32 to vector<8x128xf32>
    %17 = arith.mulf %5, %16 : vector<8x128xf32>
    %18 = math.erf %17 : vector<8x128xf32>
    %cst_8 = arith.constant 1.000000e+00 : f32
    %19 = vector.broadcast %cst_8 : f32 to vector<8x128xf32>
    %20 = arith.addf %19, %18 : vector<8x128xf32>
    %21 = arith.mulf %15, %20 : vector<8x128xf32>
    %cst_9 = arith.constant 0xFF800000 : f32
    %22 = vector.broadcast %cst_9 : f32 to vector<8x128xf32>
    %23 = arith.select %13, %5, %22 : vector<8x128xi1>, vector<8x128xf32>
    %cst_10 = arith.constant dense<0xFF800000> : vector<8xf32>
    %24 = vector.multi_reduction <maximumf>, %23, %cst_10 [1] : vector<8x128xf32> to vector<8xf32>
    %25 = vector.shape_cast %24 : vector<8xf32> to vector<8x1xf32>
    %26 = vector.broadcast %25 : vector<8x1xf32> to vector<8x128xf32>
    %27 = arith.subf %23, %26 : vector<8x128xf32>
    %28 = math.exp %27 : vector<8x128xf32>
    %cst_11 = arith.constant dense<0.000000e+00> : vector<8xf32>
    %29 = vector.multi_reduction <add>, %28, %cst_11 [1] : vector<8x128xf32> to vector<8xf32>
    %30 = vector.shape_cast %29 : vector<8xf32> to vector<8x1xf32>
    %31 = tpu.reciprocal %30 : vector<8x1xf32> -> vector<8x1xf32>
    %32 = vector.broadcast %31 : vector<8x1xf32> to vector<8x128xf32>
    %33 = arith.mulf %28, %32 : vector<8x128xf32>
    %34 = arith.select %8, %21, %33 : vector<8x128xi1>, vector<8x128xf32>
    %c0_12 = arith.constant 0 : index
    %c0_13 = arith.constant 0 : index
    %35 = vector.load %arg4[%c0_12, %c0_13] : memref<8x128xf32, #tpu.memory_space<vmem>>, vector<8x128xf32>
    tpu.vector_store %arg4[%c0_12, %c0_13], %34 {strides = array<i32>} : memref<8x128xf32, #tpu.memory_space<vmem>>, vector<8x128xf32>,
    return
  }
  func.func @transform_0(%arg0: i32) -> (i32, i32) {
    %c0_i32 = arith.constant 0 : i32
    %c0_i32_0 = arith.constant 0 : i32
    return %arg0, %c0_i32 : i32, i32
  }
  func.func @transform_1(%arg0: i32) -> (i32, i32) {
    %c0_i32 = arith.constant 0 : i32
    %c0_i32_0 = arith.constant 0 : i32
    %c0_i32_1 = arith.constant 0 : i32
    return %c0_i32, %c0_i32_0 : i32, i32
  }
  func.func @transform_2(%arg0: i32) -> (i32, i32) {
    %c0_i32 = arith.constant 0 : i32
    %c0_i32_0 = arith.constant 0 : i32
    %c0_i32_1 = arith.constant 0 : i32
    return %c0_i32, %c0_i32_0 : i32, i32
  }
  func.func @transform_3(%arg0: i32) -> (i32, i32) {
    %c0_i32 = arith.constant 0 : i32
    %c0_i32_0 = arith.constant 0 : i32
    return %arg0, %c0_i32 : i32, i32
  }
}

</mosaic_0001>

<llo_original>
// kernel: tpu_custom_call.1
$region0: #{tpu_custom_call.1}
  #allocation0 [shape = 'u32[]', space=smem, size = 0x4, offset = 0x4, fixed_abs, tag = 'smem constant byte address 0x4 - core index']
  #allocation1 [shape = 'u32[144,128]{1,0:T(1,128)}', space=vmem, size = 0x12000, scoped, tag = 'internal scratch']
  %s0 = inlined_call_operand.hbm [shape: f32[8,32], index: 0, kind: input, shape index: {}]
  %s1 = inlined_call_operand.hbm [shape: f32[32,128], index: 1, kind: input, shape index: {}]
  %s2 = inlined_call_operand.vmem [shape: f32[1,128], index: 2, kind: input, shape index: {}]
  %s3 = inlined_call_operand.hbm [shape: f32[8,128], index: 3, kind: output, shape index: {}]
  %s4 = sld [smem:[#allocation0]]
  $region30: #{tpu_custom_call.1} parent=0
    _
  %s6 = ssub.s32 1, %s4
  %s7 = scalar_select 0, %s6, %s4
  $region1: #{tpu_custom_call.1} parent=0
    #allocation2 [shape = 'u8[4096]{0}', space=vmem, size = 0x1000, scoped, tag = 'input window, operand 0, single buffered']
    #allocation3 [shape = 's32[1]{0}', space=sflag, size = 0x4, scoped, tag = 'scoped memory for tpu_custom_call.1']
    #allocation4 [shape = 's32[1]{0}', space=sflag, size = 0x4, scoped, tag = 'scoped memory for tpu_custom_call.1']
    #allocation5 [shape = 'u8[16384]{0}', space=vmem, size = 0x4000, scoped, tag = 'input window, operand 1, single buffered']
    #allocation6 [shape = 's32[1]{0}', space=sflag, size = 0x4, scoped, tag = 'scoped memory for tpu_custom_call.1']
    #allocation7 [shape = 'u8[4096]{0}', space=vmem, size = 0x1000, scoped, tag = 'output window, operand 0, single buffered']
    %8 = vsyncpa [#allocation3], 0
    %9 = vsyncpa [#allocation6], 0
    %10 = vsyncpa [#allocation4], 0
    // Predicated region
    $region2: #{tpu_custom_call.1} parent=1 // pred_check
      _
    $region3: #{tpu_custom_call.1} parent=1 // pred_check_branch
      %12 = sbr.rel (0) target = $region5
    $region4: #{tpu_custom_call.1} parent=1 // pred_region
      %s14 = ssub.s32 128, 128
      %15 = vsyncadd [#allocation3], %s14
      %s17 = sshll.u32 [#allocation2], 4
      %s18 = int_to_ptr.vmem [resolvable:$true] %s17
      %20 = dma.hbm_to_vmem [thread:$0]  %s0, 128, %s18, [#allocation3]
    $region5: #{tpu_custom_call.1} parent=1 // pred_fallthru
      _
    // Predicated region
    $region6: #{tpu_custom_call.1} parent=1 // pred_check
      _
    $region7: #{tpu_custom_call.1} parent=1 // pred_check_branch
      %22 = sbr.rel (0) target = $region9
    $region8: #{tpu_custom_call.1} parent=1 // pred_region
      %s24 = ssub.s32 512, 512
      %25 = vsyncadd [#allocation6], %s24
      %s26 = sshll.u32 [#allocation5], 4
      %s27 = int_to_ptr.vmem [resolvable:$true] %s26
      %32 = dma.hbm_to_vmem [thread:$0]  %s1, 512, %s27, [#allocation6], 128, 128, 8
    $region9: #{tpu_custom_call.1} parent=1 // pred_fallthru
      _
    // Predicated region
    $region10: #{tpu_custom_call.1} parent=1 // pred_check
      _
    $region11: #{tpu_custom_call.1} parent=1 // pred_check_branch
      %34 = sbr.rel (0) target = $region13
    $region12: #{tpu_custom_call.1} parent=1 // pred_region
      _
    $region13: #{tpu_custom_call.1} parent=1 // pred_fallthru
      _
    // Predicated region
    $region14: #{tpu_custom_call.1} parent=1 // pred_check
      _
    $region15: #{tpu_custom_call.1} parent=1 // pred_check_branch
      %36 = sbr.rel (0) target = $region17
    $region16: #{tpu_custom_call.1} parent=1 // pred_region
      %37 = dma.done [#allocation3], 128
    $region17: #{tpu_custom_call.1} parent=1 // pred_fallthru
      _
    // Predicated region
    $region18: #{tpu_custom_call.1} parent=1 // pred_check
      _
    $region19: #{tpu_custom_call.1} parent=1 // pred_check_branch
      %39 = sbr.rel (0) target = $region21
    $region20: #{tpu_custom_call.1} parent=1 // pred_region
      %40 = dma.done [#allocation6], 512
    $region21: #{tpu_custom_call.1} parent=1 // pred_fallthru
      _
    %v41 = vld [vmem:[#allocation2] sm:$0xff]
    %v42 = vld [vmem:[#allocation5] sm:$0xff]
    %v43 = vld [vmem:[#allocation5 + $0x8] sm:$0xff]
    %v44 = vld [vmem:[#allocation5 + $0x10] sm:$0xff]
    %v45 = vld [vmem:[#allocation5 + $0x18] sm:$0xff]
    %v46 = vld [vmem:[%s2] sm:$0x1]
    %v48 = vlaneseq
    %v49 = vshrl.u32 %v48, 7
    %v50 = vsub.s32 0, %v49
    %v51 = vrot.slane %v46, %v50
    %vm53 = vcmask 261120
    %v55 = vsel %vm53, %v41, 0
    %57 = vmatprep.subr.mxu0 0.0
    %58 = vmatpush1.msra.mxu0 %v42
    %59 = vmatprep.subr.mxu0 0.0
    %60 = vmatpush1.msra.mxu0 %v43
    %61 = vmatprep.subr.mxu0 0.0
    %62 = vmatpush1.msra.mxu0 %v44
    %63 = vmatprep.subr.mxu0 0.0
    %64 = vmatpush1.msra.mxu0 %v45
    %65 = vmatprep.subr.mxu0 0.0
    %66 = vmatpush1.msra.mxu0 0.0
    %67 = vmatprep.subr.mxu0 0.0
    %68 = vmatpush1.msra.mxu0 0.0
    %69 = vmatprep.subr.mxu0 0.0
    %70 = vmatpush1.msra.mxu0 0.0
    %71 = vmatprep.subr.mxu0 0.0
    %72 = vmatpush1.msra.mxu0 0.0
    %73 = vmatprep.subr.mxu0 0.0
    %74 = vmatpush1.msra.mxu0 0.0
    %75 = vmatprep.subr.mxu0 0.0
    %76 = vmatpush1.msra.mxu0 0.0
    %77 = vmatprep.subr.mxu0 0.0
    %78 = vmatpush1.msra.mxu0 0.0
    %79 = vmatprep.subr.mxu0 0.0
    %80 = vmatpush1.msra.mxu0 0.0
    %81 = vmatprep.subr.mxu0 0.0
    %82 = vmatpush1.msra.mxu0 0.0
    %83 = vmatprep.subr.mxu0 0.0
    %84 = vmatpush1.msra.mxu0 0.0
    %85 = vmatprep.subr.mxu0 0.0
    %86 = vmatpush1.msra.mxu0 0.0
    %87 = vmatprep.subr.mxu0 0.0
    %88 = vmatpush1.msra.mxu0 0.0
    %89 = vmatprep.subr.mxu0 0.0
    %90 = vmatpush1.msra.mxu0 0.0
    %91 = vmatprep.subr.mxu0 0.0
    %92 = vmatpush1.msra.mxu0 0.0
    %93 = vmatprep.subr.mxu0 0.0
    %94 = vmatpush1.msra.mxu0 0.0
    %95 = vmatprep.subr.mxu0 0.0
    %96 = vmatpush1.msra.mxu0 0.0
    %97 = vmatprep.subr.mxu0 0.0
    %98 = vmatpush1.msra.mxu0 0.0
    %99 = vmatprep.subr.mxu0 0.0
    %100 = vmatpush1.msra.mxu0 0.0
    %101 = vmatprep.subr.mxu0 0.0
    %102 = vmatpush1.msra.mxu0 0.0
    %103 = vmatprep.subr.mxu0 0.0
    %104 = vmatpush1.msra.mxu0 0.0
    %105 = vmatprep.subr.mxu0 0.0
    %106 = vmatpush1.msra.mxu0 0.0
    %107 = vmatprep.subr.mxu0 0.0
    %108 = vmatpush1.msra.mxu0 0.0
    %109 = vmatprep.subr.mxu0 0.0
    %110 = vmatpush1.msra.mxu0 0.0
    %111 = vmatprep.subr.mxu0 0.0
    %112 = vmatpush1.msra.mxu0 0.0
    %113 = vmatprep.subr.mxu0 0.0
    %114 = vmatpush1.msra.mxu0 0.0
    %115 = vmatprep.subr.mxu0 0.0
    %116 = vmatpush1.msra.mxu0 0.0
    %117 = vmatprep.subr.mxu0 0.0
    %118 = vmatpush1.msra.mxu0 0.0
    %119 = vmatprep.subr.mxu0 0.0
    %120 = vmatpush1.msra.mxu0 0.0
    %121 = vmatprep.mubr.f32.mxu0 0.0
    %122 = vmatmul.mubr.f32.gmra.mrb[0].mxu0 %v55
    %v123 = vpop.f32.mrb[0].mxu0
    %v124 = vadd.f32 %v51, %v123
    %v125 = vpop.f32.mrb[0].mxu0
    %126 = vdwg.mxu0
    %v127 = vlaneseq
    %v128 = vand.u32 %v127, 127
    %vm129 = vcmp.lt.s32.totalorder %v128, 16
    %vm130 = vcmp.ge.s32.totalorder %v128, 16
    %vm131 = vcmp.lt.s32.totalorder %v128, 32
    %vm132 = vmand %vm130, %vm131
    %v133 = vmul.f32 %v124, 0.5
    %v134 = vmul.f32 %v124, 0.70710677
    %v135 = verf.f32.pop %v134
    %v136 = vadd.f32 %v135, 1.0
    %v137 = vmul.f32 %v133, %v136
    %v138 = vsel %vm132, %v124, -inf
    %139 = vmax.xlane.f32.xlu0 %v138
    %v140 = vpop.xlane.xlu0 %139
    %v141 = vsub.f32 %v138, %v140
    %v142 = vmul.f32 %v141, 1.442695
    %v143 = vpow.pop %v142
    %144 = vadd.xlane.f32.xlu0 %v143
    %v145 = vpop.xlane.xlu0 %144
    %v146 = vrcp.pop %v145
    %v147 = vmul.f32 %v143, %v146
    %v148 = vsel %vm129, %v137, %v147
    %149 = vst [vmem:[#allocation7] sm:$0xff] %v148
    // Predicated region
    $region22: #{tpu_custom_call.1} parent=1 // pred_check
      _
    $region23: #{tpu_custom_call.1} parent=1 // pred_check_branch
      %151 = sbr.rel (0) target = $region25
    $region24: #{tpu_custom_call.1} parent=1 // pred_region
      %s153 = ssub.s32 128, 128
      %154 = vsyncadd [#allocation4], %s153
      %s156 = sshll.u32 [#allocation7], 4
      %s157 = int_to_ptr.vmem [resolvable:$true] %s156
      %159 = dma.vmem_to_hbm [thread:$0]  %s157, 128, %s3, [#allocation4]
    $region25: #{tpu_custom_call.1} parent=1 // pred_fallthru
      _
    // Predicated region
    $region26: #{tpu_custom_call.1} parent=1 // pred_check
      _
    $region27: #{tpu_custom_call.1} parent=1 // pred_check_branch
      %161 = sbr.rel (0) target = $region29
    $region28: #{tpu_custom_call.1} parent=1 // pred_region
      %162 = dma.done [#allocation4], 128
    $region29: #{tpu_custom_call.1} parent=1 // pred_fallthru
      _
    %163 = vsyncpa [#allocation3], 1
    %164 = vsyncpa [#allocation6], 1
    %165 = vsyncpa [#allocation4], 1

</llo_original>
